<compile_context>
chip_gen: v5e
topology: v5e:2x2
jax: 0.10.0
libtpu: 0.0.40
codegen_flags: <defaults>
</compile_context>

<pallas_src>
import functools

import jax
import jax.numpy as jnp
from jax import lax
from jax.experimental import pallas as pl
from jax.experimental.pallas import tpu as pltpu


def _round_up(x, m):
    return ((x + m - 1) // m) * m


def _tpu_caps():
    """(per-core VMEM bytes, has-multiple-TensorCores) with safe fallbacks."""
    kind = ""
    try:
        kind = jax.devices()[0].device_kind.lower()
    except Exception:
        pass
    vmem = None
    try:
        vmem = int(pltpu.get_tpu_info().vmem_capacity_bytes)
    except Exception:
        vmem = None
    if vmem is None:
        vmem = 64 * 2**20 if "7" in kind else 128 * 2**20
    if "7" in kind:                       # v7x: 64 MiB per TensorCore, 2 TCs/chip
        vmem = min(vmem, 64 * 2**20)
    multi_tc = any(tag in kind for tag in ("v4", "v5p", "7"))
    return vmem, multi_tc


def decoder_kernel(
    pt_ref,                      # (tt, 128)      f32  : times * W1_time (traj tile)
    hz_ref,                      # (bb, h+z)      cdt  : concat(h, z) batch tile
    w1hz_ref,                    # (h+z, 128)     cdt  (resident)
    b1_ref,                      # (1, 128)       f32  (resident)
    w2_ref, b2_ref,              # (128, 128) cdt, (1, 128) f32
    w3_ref, b3_ref,
    w4_ref, b4_ref,
    wh_ref, bh_ref,              # fused mu|sigma head: (128, 2*xs) cdt, (1, 2*xs) f32
    out_ref,                     # (bb, tt, 2*xs) f32
):
    f32 = jnp.float32
    bb, tt, two_xs = out_ref.shape
    x_size = two_xs // 2
    cdt = w2_ref.dtype           # matmul compute dtype (bf16 or f32)

    # ---- layer 1, decomposed: per-batch part once per batch row, per-time ----
    # ---- part precomputed in the wrapper; combined by leading-dim broadcast ---
    per_batch = (jnp.dot(hz_ref[...], w1hz_ref[...], preferred_element_type=f32)
                 + b1_ref[...])                                  # (bb, 128)
    pre1 = per_batch[:, None, :] + pt_ref[...][None, :, :]       # (bb, tt, 128)
    h = jnp.maximum(pre1, 0.0).reshape(bb * tt, 128)             # leading-dim collapse

    def layer(x, w_ref, b_ref):
        y = jnp.dot(x.astype(cdt), w_ref[...], preferred_element_type=f32)
        return jnp.maximum(y + b_ref[...], 0.0)

    h = layer(h, w2_ref, b2_ref)
    h = layer(h, w3_ref, b3_ref)
    h = layer(h, w4_ref, b4_ref)

    # ---- fused mu|sigma head: one matmul, one output stream ----
    head = (jnp.dot(h.astype(cdt), wh_ref[...], preferred_element_type=f32)
            + bh_ref[...])                                       # (rows, 2*xs)

    # sigma columns (>= x_size) get 0.1 + 0.9*softplus; mask is one tiny vreg.
    sig_col = lax.broadcasted_iota(jnp.int32, (1, two_xs), 1) >= x_size
    softp = jnp.maximum(head, 0.0) + jnp.log1p(jnp.exp(-jnp.abs(head)))
    out = jnp.where(sig_col, 0.1 + 0.9 * softp, head)
    out_ref[...] = out.reshape(bb, tt, two_xs).astype(out_ref.dtype)


def init_decoder_params(key, x_size, h_size, z_size, dtype=jnp.float32):
    """Deterministic parameter init (shapes mirror the PyTorch module; W = weight.T)."""
    d_in = h_size + z_size + 1
    dims = [(d_in, 128), (128, 128), (128, 128), (128, 128)]
    params = {}
    keys = jax.random.split(key, 6)
    for i, (din, dout) in enumerate(dims):
        kw, kb = jax.random.split(keys[i])
        bound = 1.0 / jnp.sqrt(din)
        params[f"w{i + 1}"] = jax.random.uniform(kw, (din, dout), dtype, -bound, bound)
        params[f"b{i + 1}"] = jax.random.uniform(kb, (1, dout), dtype, -bound, bound)
    for name, k in (("mu", keys[4]), ("sig", keys[5])):
        kw, kb = jax.random.split(k)
        bound = 1.0 / jnp.sqrt(128)
        params[f"w{name}"] = jax.random.uniform(kw, (128, x_size), dtype, -bound, bound)
        params[f"b{name}"] = jax.random.uniform(kb, (1, x_size), dtype, -bound, bound)
    return params


@functools.partial(jax.jit, static_argnames=("x_size", "h_size", "z_size",
                                             "block_rows", "compute_dtype"))
def decoder_forward(times, h_vector, z_vector, params, *, x_size, h_size, z_size,
                    block_rows=8192, compute_dtype=jnp.bfloat16):
    """
    times:    (traj_len,)
    h_vector: (batch, h_size)
    z_vector: (batch, z_size)
    returns (mu, sigma), each (batch, traj_len, x_size), always float32.
    compute_dtype=jnp.bfloat16 (default) runs the matmuls in bf16 with f32
    accumulation; pass jnp.float32 for bit-faithful-to-reference numerics.
    """
    batch = h_vector.shape[0]
    traj_len = times.shape[0]
    f32 = jnp.float32
    cdt = jnp.dtype(compute_dtype)
    hz_size = h_size + z_size
    out_cols = 2 * x_size
    out_cols_pad = _round_up(out_cols, 128)          # lane padding of VMEM tiles

    # ---------------- generation-aware VMEM budget & tile selection ----------------
    vmem_cap, multi_tc = _tpu_caps()
    vmem_budget = min(48 * 2**20, vmem_cap // 2)     # never the whole physical VMEM
    w_bytes = (hz_size * 128 + 3 * 128 * 128 + 128 * out_cols_pad) * cdt.itemsize
    fixed_bytes = 2 * w_bytes + 2 * 2**20            # resident weights x2 buffers + slack
    row_bytes = (2 * out_cols_pad * 4                # double-buffered output tile
                 + 3 * 128 * 4                       # live f32 (rows,128) intermediates
                 + 2 * out_cols_pad * 4              # head + epilogue temporaries
                 + 128)                              # per-time tile share
    max_rows = max(64, ((vmem_budget - fixed_bytes) // row_bytes) // 8 * 8)
    target_rows = max(64, min(int(block_rows), max_rows))

    tl8 = _round_up(traj_len, 8)
    bb_cap = _round_up(batch, 8)
    if 8 * tl8 <= target_rows:
        tt = tl8                                     # whole trajectory per step
        bb = max(8, min(bb_cap, (target_rows // tt) // 8 * 8))
        nbi = -(-batch // bb)
        bb = _round_up(-(-batch // nbi), 8)          # rebalance: minimize batch padding
    else:
        bb = 8                                       # long trajectory: tile the traj axis
        tt = max(8, min(tl8, (target_rows // bb) // 8 * 8))
        nbj = -(-tl8 // tt)
        tt = _round_up(-(-tl8 // nbj), 8)            # rebalance: minimize traj padding

    def _dims(bb_, tt_):
        bp, tp = _round_up(batch, bb_), _round_up(traj_len, tt_)
        return bp, tp, bp // bb_, tp // tt_

    batch_pad, tl_pad, nbi, nbj = _dims(bb, tt)
    if multi_tc and nbi * nbj < 2:                   # v7x / megacore: feed both cores
        if bb >= 16:
            bb = max(8, (bb // 2) // 8 * 8)
        elif tt >= 16:
            tt = max(8, (tt // 2) // 8 * 8)
        batch_pad, tl_pad, nbi, nbj = _dims(bb, tt)

    # ---------------- operand prep (all tiny; weights stay VMEM-resident) ----------------
    w1 = params["w1"].astype(f32)
    # per-time contribution of layer 1, precomputed once (tiled along the traj axis)
    pt = jnp.zeros((tl_pad, 128), f32).at[:traj_len].set(
        times.astype(f32)[:, None] * w1[0:1, :])
    # fused (h | z) input and (W1_h | W1_z) weight
    hz = jnp.zeros((batch_pad, hz_size), cdt)
    hz = hz.at[:batch, :h_size].set(h_vector.astype(cdt))
    hz = hz.at[:batch, h_size:].set(z_vector.astype(cdt))
    w1hz = w1[1:1 + hz_size, :].astype(cdt)
    b1 = params["b1"].astype(f32)
    w2, b2 = params["w2"].astype(cdt), params["b2"].astype(f32)
    w3, b3 = params["w3"].astype(cdt), params["b3"].astype(f32)
    w4, b4 = params["w4"].astype(cdt), params["b4"].astype(f32)
    wh = jnp.concatenate([params["wmu"], params["wsig"]], axis=1).astype(cdt)
    bh = jnp.concatenate([params["bmu"], params["bsig"]], axis=1).astype(f32)

    def resident(a):                                 # grid-invariant operand
        return pl.BlockSpec(a.shape, lambda i, j: (0, 0))

    in_specs = [
        pl.BlockSpec((tt, 128), lambda i, j: (j, 0)),        # per-time tile
        pl.BlockSpec((bb, hz_size), lambda i, j: (i, 0)),    # (h|z) batch tile
        resident(w1hz), resident(b1),
        resident(w2), resident(b2),
        resident(w3), resident(b3),
        resident(w4), resident(b4),
        resident(wh), resident(bh),
    ]
    out_specs = pl.BlockSpec((bb, tt, out_cols), lambda i, j: (i, j, 0))

    out3 = pl.pallas_call(
        decoder_kernel,
        out_shape=jax.ShapeDtypeStruct((batch_pad, tl_pad, out_cols), f32),
        grid_spec=pltpu.PrefetchScalarGridSpec(
            num_scalar_prefetch=0,
            grid=(nbi, nbj),
            in_specs=in_specs,
            out_specs=out_specs,
        ),
        compiler_params=pltpu.CompilerParams(
            dimension_semantics=("parallel", "parallel"),
            vmem_limit_bytes=int(vmem_budget),
        ),
    )(pt, hz, w1hz, b1, w2, b2, w3, b3, w4, b4, wh, bh)

    mu = out3[:batch, :traj_len, :x_size]
    sigma = out3[:batch, :traj_len, x_size:]
    return mu, sigma


def _reference_forward(times, h_vector, z_vector, params, x_size, h_size, z_size):
    batch = h_vector.shape[0]
    traj_len = times.shape[0]
    n = batch * traj_len
    t_flat = jnp.broadcast_to(times[None, :, None], (batch, traj_len, 1)).reshape(n, 1)
    h_flat = jnp.broadcast_to(h_vector[:, None, :], (batch, traj_len, h_size)).reshape(n, h_size)
    z_flat = jnp.broadcast_to(z_vector[:, None, :], (batch, traj_len, z_size)).reshape(n, z_size)
    h = jnp.concatenate([t_flat, h_flat, z_flat], axis=1)
    for i in range(1, 5):
        h = jnp.maximum(h @ params[f"w{i}"] + params[f"b{i}"], 0.0)
    mu = h @ params["wmu"] + params["bmu"]
    sigma = 0.1 + 0.9 * jax.nn.softplus(h @ params["wsig"] + params["bsig"])
    return (mu.reshape(batch, traj_len, x_size),
            sigma.reshape(batch, traj_len, x_size))


if __name__ == "__main__":
    # Small shapes consistent with the module's forward:
    #   times: (traj_len,), h_vector: (batch, h_size), z_vector: (batch, z_size)
    batch, traj_len = 2, 8
    x_size, h_size, z_size = 4, 32, 32

    key = jax.random.PRNGKey(0)
    k_t, k_h, k_z, k_p = jax.random.split(key, 4)
    times = jax.random.uniform(k_t, (traj_len,), jnp.float32)
    h_vec = jax.random.normal(k_h, (batch, h_size), jnp.float32)
    z_vec = jax.random.normal(k_z, (batch, z_size), jnp.float32)
    params = init_decoder_params(k_p, x_size, h_size, z_size)

    mu_ref, sigma_ref = _reference_forward(times, h_vec, z_vec, params,
                                           x_size, h_size, z_size)

    # f32 compute path (matches the PyTorch module's numerics).
    mu32, sig32 = decoder_forward(times, h_vec, z_vec, params,
                                  x_size=x_size, h_size=h_size, z_size=z_size,
                                  compute_dtype=jnp.float32)
    jax.block_until_ready((mu32, sig32))
    assert mu32.shape == (batch, traj_len, x_size)
    assert sig32.shape == (batch, traj_len, x_size)
    assert jnp.allclose(mu32, mu_ref, atol=2e-4, rtol=2e-4)
    assert jnp.allclose(sig32, sigma_ref, atol=2e-4, rtol=2e-4)

    # default bf16 matmul path (recommended on v6e / v7x) — loose sanity check.
    mu_bf, sig_bf = decoder_forward(times, h_vec, z_vec, params,
                                    x_size=x_size, h_size=h_size, z_size=z_size)
    jax.block_until_ready((mu_bf, sig_bf))
    assert jnp.allclose(mu_bf, mu_ref, atol=1e-1, rtol=1e-1)
    assert jnp.allclose(sig_bf, sigma_ref, atol=1e-1, rtol=1e-1)

    # exercise batch + trajectory tiling (multi-block grid, padded traj) in f32.
    b2, t2 = 16, 40
    k_t2, k_h2, k_z2 = jax.random.split(jax.random.PRNGKey(1), 3)
    times2 = jax.random.uniform(k_t2, (t2,), jnp.float32)
    h2 = jax.random.normal(k_h2, (b2, h_size), jnp.float32)
    z2 = jax.random.normal(k_z2, (b2, z_size), jnp.float32)
    mu2, sig2 = decoder_forward(times2, h2, z2, params,
                                x_size=x_size, h_size=h_size, z_size=z_size,
                                block_rows=128, compute_dtype=jnp.float32)
    jax.block_until_ready((mu2, sig2))
    mu2_ref, sig2_ref = _reference_forward(times2, h2, z2, params,
                                           x_size, h_size, z_size)
    assert jnp.allclose(mu2, mu2_ref, atol=2e-4, rtol=2e-4)
    assert jnp.allclose(sig2, sig2_ref, atol=2e-4, rtol=2e-4)

    print("KERNEL_OK")
</pallas_src>

<mosaic_0001>
module attributes {stable_mosaic.version = 11 : i64} {
  func.func @decoder_kernel(%arg0: i32, %arg1: i32, %arg2: memref<8x128xf32, #tpu.memory_space<vmem>>, %arg3: memref<8x64xf32, #tpu.memory_space<vmem>>, %arg4: memref<64x128xf32, #tpu.memory_space<vmem>>, %arg5: memref<1x128xf32, #tpu.memory_space<vmem>>, %arg6: memref<128x128xf32, #tpu.memory_space<vmem>>, %arg7: memref<1x128xf32, #tpu.memory_space<vmem>>, %arg8: memref<128x128xf32, #tpu.memory_space<vmem>>, %arg9: memref<1x128xf32, #tpu.memory_space<vmem>>, %arg10: memref<128x128xf32, #tpu.memory_space<vmem>>, %arg11: memref<1x128xf32, #tpu.memory_space<vmem>>, %arg12: memref<128x8xf32, #tpu.memory_space<vmem>>, %arg13: memref<1x8xf32, #tpu.memory_space<vmem>>, %arg14: memref<8x8x8xf32, #tpu.memory_space<vmem>>) attributes {dimension_semantics = [#tpu.dimension_semantics<parallel>, #tpu.dimension_semantics<parallel>], iteration_bounds = array<i64: 1, 1>, scalar_prefetch = 0 : i64, scratch_operands = 0 : i64, tpu.core_type = #tpu.core_type<tc>, window_params = [{transform_indices = @transform_0, window_bounds = array<i64: 8, 128>}, {transform_indices = @transform_1, window_bounds = array<i64: 8, 64>}, {pipeline_mode = #tpu.pipeline_mode<synchronous>, transform_indices = @transform_2, window_bounds = array<i64: 64, 128>}, {pipeline_mode = #tpu.pipeline_mode<synchronous>, transform_indices = @transform_3, window_bounds = array<i64: 1, 128>}, {pipeline_mode = #tpu.pipeline_mode<synchronous>, transform_indices = @transform_4, window_bounds = array<i64: 128, 128>}, {pipeline_mode = #tpu.pipeline_mode<synchronous>, transform_indices = @transform_5, window_bounds = array<i64: 1, 128>}, {pipeline_mode = #tpu.pipeline_mode<synchronous>, transform_indices = @transform_6, window_bounds = array<i64: 128, 128>}, {pipeline_mode = #tpu.pipeline_mode<synchronous>, transform_indices = @transform_7, window_bounds = array<i64: 1, 128>}, {pipeline_mode = #tpu.pipeline_mode<synchronous>, transform_indices = @transform_8, window_bounds = array<i64: 128, 128>}, {pipeline_mode = #tpu.pipeline_mode<synchronous>, transform_indices = @transform_9, window_bounds = array<i64: 1, 128>}, {pipeline_mode = #tpu.pipeline_mode<synchronous>, transform_indices = @transform_10, window_bounds = array<i64: 128, 8>}, {pipeline_mode = #tpu.pipeline_mode<synchronous>, transform_indices = @transform_11, window_bounds = array<i64: 1, 8>}, {transform_indices = @transform_12, window_bounds = array<i64: 8, 8, 8>}]} {
    %c0 = arith.constant 0 : index
    %c0_0 = arith.constant 0 : index
    %0 = vector.load %arg3[%c0, %c0_0] : memref<8x64xf32, #tpu.memory_space<vmem>>, vector<8x64xf32>
    %c0_1 = arith.constant 0 : index
    %c0_2 = arith.constant 0 : index
    %1 = vector.load %arg4[%c0_1, %c0_2] : memref<64x128xf32, #tpu.memory_space<vmem>>, vector<64x128xf32>
    %cst = arith.constant dense<0.000000e+00> : vector<8x128xf32>
    %2 = tpu.matmul %0, %1, %cst {dimension_numbers = #tpu.dot_dimension_numbers<[1], [0], [0], [1], [0, 0, 1, 1], [], []>} : vector<8x64xf32>, vector<64x128xf32>, vector<8x128xf32> -> vector<8x128xf32>
    %c0_3 = arith.constant 0 : index
    %c0_4 = arith.constant 0 : index
    %3 = vector.load %arg5[%c0_3, %c0_4] : memref<1x128xf32, #tpu.memory_space<vmem>>, vector<1x128xf32>
    %4 = vector.broadcast %3 : vector<1x128xf32> to vector<8x128xf32>
    %5 = arith.addf %2, %4 : vector<8x128xf32>
    %6 = vector.shape_cast %5 : vector<8x128xf32> to vector<8x1x128xf32>
    %c0_5 = arith.constant 0 : index
    %c0_6 = arith.constant 0 : index
    %7 = vector.load %arg2[%c0_5, %c0_6] : memref<8x128xf32, #tpu.memory_space<vmem>>, vector<8x128xf32>
    %8 = vector.shape_cast %7 : vector<8x128xf32> to vector<1x8x128xf32>
    %9 = vector.broadcast %6 : vector<8x1x128xf32> to vector<8x8x128xf32>
    %10 = vector.broadcast %8 : vector<1x8x128xf32> to vector<8x8x128xf32>
    %11 = arith.addf %9, %10 : vector<8x8x128xf32>
    %cst_7 = arith.constant 0.000000e+00 : f32
    %12 = vector.broadcast %cst_7 : f32 to vector<8x8x128xf32>
    %13 = arith.maximumf %11, %12 : vector<8x8x128xf32>
    %14 = vector.shape_cast %13 : vector<8x8x128xf32> to vector<64x128xf32>
    %c0_8 = arith.constant 0 : index
    %c0_9 = arith.constant 0 : index
    %15 = vector.load %arg6[%c0_8, %c0_9] : memref<128x128xf32, #tpu.memory_space<vmem>>, vector<128x128xf32>
    %cst_10 = arith.constant dense<0.000000e+00> : vector<64x128xf32>
    %16 = tpu.matmul %14, %15, %cst_10 {dimension_numbers = #tpu.dot_dimension_numbers<[1], [0], [0], [1], [0, 0, 1, 1], [], []>} : vector<64x128xf32>, vector<128x128xf32>, vector<64x128xf32> -> vector<64x128xf32>
    %c0_11 = arith.constant 0 : index
    %c0_12 = arith.constant 0 : index
    %17 = vector.load %arg7[%c0_11, %c0_12] : memref<1x128xf32, #tpu.memory_space<vmem>>, vector<1x128xf32>
    %18 = vector.broadcast %17 : vector<1x128xf32> to vector<64x128xf32>
    %19 = arith.addf %16, %18 : vector<64x128xf32>
    %cst_13 = arith.constant 0.000000e+00 : f32
    %20 = vector.broadcast %cst_13 : f32 to vector<64x128xf32>
    %21 = arith.maximumf %19, %20 : vector<64x128xf32>
    %c0_14 = arith.constant 0 : index
    %c0_15 = arith.constant 0 : index
    %22 = vector.load %arg8[%c0_14, %c0_15] : memref<128x128xf32, #tpu.memory_space<vmem>>, vector<128x128xf32>
    %cst_16 = arith.constant dense<0.000000e+00> : vector<64x128xf32>
    %23 = tpu.matmul %21, %22, %cst_16 {dimension_numbers = #tpu.dot_dimension_numbers<[1], [0], [0], [1], [0, 0, 1, 1], [], []>} : vector<64x128xf32>, vector<128x128xf32>, vector<64x128xf32> -> vector<64x128xf32>
    %c0_17 = arith.constant 0 : index
    %c0_18 = arith.constant 0 : index
    %24 = vector.load %arg9[%c0_17, %c0_18] : memref<1x128xf32, #tpu.memory_space<vmem>>, vector<1x128xf32>
    %25 = vector.broadcast %24 : vector<1x128xf32> to vector<64x128xf32>
    %26 = arith.addf %23, %25 : vector<64x128xf32>
    %cst_19 = arith.constant 0.000000e+00 : f32
    %27 = vector.broadcast %cst_19 : f32 to vector<64x128xf32>
    %28 = arith.maximumf %26, %27 : vector<64x128xf32>
    %c0_20 = arith.constant 0 : index
    %c0_21 = arith.constant 0 : index
    %29 = vector.load %arg10[%c0_20, %c0_21] : memref<128x128xf32, #tpu.memory_space<vmem>>, vector<128x128xf32>
    %cst_22 = arith.constant dense<0.000000e+00> : vector<64x128xf32>
    %30 = tpu.matmul %28, %29, %cst_22 {dimension_numbers = #tpu.dot_dimension_numbers<[1], [0], [0], [1], [0, 0, 1, 1], [], []>} : vector<64x128xf32>, vector<128x128xf32>, vector<64x128xf32> -> vector<64x128xf32>
    %c0_23 = arith.constant 0 : index
    %c0_24 = arith.constant 0 : index
    %31 = vector.load %arg11[%c0_23, %c0_24] : memref<1x128xf32, #tpu.memory_space<vmem>>, vector<1x128xf32>
    %32 = vector.broadcast %31 : vector<1x128xf32> to vector<64x128xf32>
    %33 = arith.addf %30, %32 : vector<64x128xf32>
    %cst_25 = arith.constant 0.000000e+00 : f32
    %34 = vector.broadcast %cst_25 : f32 to vector<64x128xf32>
    %35 = arith.maximumf %33, %34 : vector<64x128xf32>
    %c0_26 = arith.constant 0 : index
    %c0_27 = arith.constant 0 : index
    %36 = vector.load %arg12[%c0_26, %c0_27] : memref<128x8xf32, #tpu.memory_space<vmem>>, vector<128x8xf32>
    %cst_28 = arith.constant dense<0.000000e+00> : vector<64x8xf32>
    %37 = tpu.matmul %35, %36, %cst_28 {dimension_numbers = #tpu.dot_dimension_numbers<[1], [0], [0], [1], [0, 0, 1, 1], [], []>} : vector<64x128xf32>, vector<128x8xf32>, vector<64x8xf32> -> vector<64x8xf32>
    %c0_29 = arith.constant 0 : index
    %c0_30 = arith.constant 0 : index
    %38 = vector.load %arg13[%c0_29, %c0_30] : memref<1x8xf32, #tpu.memory_space<vmem>>, vector<1x8xf32>
    %39 = vector.broadcast %38 : vector<1x8xf32> to vector<64x8xf32>
    %40 = arith.addf %37, %39 : vector<64x8xf32>
    %41 = tpu.iota {dimensions = array<i32: 1>} : vector<1x8xi32>
    %c4_i32 = arith.constant 4 : i32
    %42 = vector.broadcast %c4_i32 : i32 to vector<1x8xi32>
    %43 = arith.cmpi sge, %41, %42 : vector<1x8xi32>
    %cst_31 = arith.constant 0.000000e+00 : f32
    %44 = vector.broadcast %cst_31 : f32 to vector<64x8xf32>
    %45 = arith.maximumf %40, %44 : vector<64x8xf32>
    %46 = math.absf %40 : vector<64x8xf32>
    %cst_32 = arith.constant 0.000000e+00 : f32
    %47 = vector.broadcast %cst_32 : f32 to vector<64x8xf32>
    %48 = arith.subf %47, %46 : vector<64x8xf32>
    %49 = math.exp %48 : vector<64x8xf32>
    %50 = math.log1p %49 : vector<64x8xf32>
    %51 = arith.addf %45, %50 : vector<64x8xf32>
    %cst_33 = arith.constant 0.899999976 : f32
    %52 = vector.broadcast %cst_33 : f32 to vector<64x8xf32>
    %53 = arith.mulf %52, %51 : vector<64x8xf32>
    %cst_34 = arith.constant 1.000000e-01 : f32
    %54 = vector.broadcast %cst_34 : f32 to vector<64x8xf32>
    %55 = arith.addf %54, %53 : vector<64x8xf32>
    %56 = vector.shape_cast %43 : vector<1x8xi1> to vector<1x8xi1>
    %57 = vector.broadcast %56 : vector<1x8xi1> to vector<64x8xi1>
    %58 = arith.select %57, %55, %40 : vector<64x8xi1>, vector<64x8xf32>
    %59 = vector.shape_cast %58 : vector<64x8xf32> to vector<8x8x8xf32>
    %c0_35 = arith.constant 0 : index
    %c0_36 = arith.constant 0 : index
    %c0_37 = arith.constant 0 : index
    %60 = vector.load %arg14[%c0_35, %c0_36, %c0_37] : memref<8x8x8xf32, #tpu.memory_space<vmem>>, vector<8x8x8xf32>
    tpu.vector_store %arg14[%c0_35, %c0_36, %c0_37], %59 {strides = array<i32>} : memref<8x8x8xf32, #tpu.memory_space<vmem>>, vector<8x8x8xf32>,
    return
  }
  func.func @transform_0(%arg0: i32, %arg1: i32) -> (i32, i32) {
    %c0_i32 = arith.constant 0 : i32
    %c0_i32_0 = arith.constant 0 : i32
    return %arg1, %c0_i32 : i32, i32
  }
  func.func @transform_1(%arg0: i32, %arg1: i32) -> (i32, i32) {
    %c0_i32 = arith.constant 0 : i32
    %c0_i32_0 = arith.constant 0 : i32
    return %arg0, %c0_i32 : i32, i32
  }
  func.func @transform_2(%arg0: i32, %arg1: i32) -> (i32, i32) {
    %c0_i32 = arith.constant 0 : i32
    %c0_i32_0 = arith.constant 0 : i32
    %c0_i32_1 = arith.constant 0 : i32
    return %c0_i32, %c0_i32_0 : i32, i32
  }
  func.func @transform_3(%arg0: i32, %arg1: i32) -> (i32, i32) {
    %c0_i32 = arith.constant 0 : i32
    %c0_i32_0 = arith.constant 0 : i32
    %c0_i32_1 = arith.constant 0 : i32
    return %c0_i32, %c0_i32_0 : i32, i32
  }
  func.func @transform_4(%arg0: i32, %arg1: i32) -> (i32, i32) {
    %c0_i32 = arith.constant 0 : i32
    %c0_i32_0 = arith.constant 0 : i32
    %c0_i32_1 = arith.constant 0 : i32
    return %c0_i32, %c0_i32_0 : i32, i32
  }
  func.func @transform_5(%arg0: i32, %arg1: i32) -> (i32, i32) {
    %c0_i32 = arith.constant 0 : i32
    %c0_i32_0 = arith.constant 0 : i32
    %c0_i32_1 = arith.constant 0 : i32
    return %c0_i32, %c0_i32_0 : i32, i32
  }
  func.func @transform_6(%arg0: i32, %arg1: i32) -> (i32, i32) {
    %c0_i32 = arith.constant 0 : i32
    %c0_i32_0 = arith.constant 0 : i32
    %c0_i32_1 = arith.constant 0 : i32
    return %c0_i32, %c0_i32_0 : i32, i32
  }
  func.func @transform_7(%arg0: i32, %arg1: i32) -> (i32, i32) {
    %c0_i32 = arith.constant 0 : i32
    %c0_i32_0 = arith.constant 0 : i32
    %c0_i32_1 = arith.constant 0 : i32
    return %c0_i32, %c0_i32_0 : i32, i32
  }
  func.func @transform_8(%arg0: i32, %arg1: i32) -> (i32, i32) {
    %c0_i32 = arith.constant 0 : i32
    %c0_i32_0 = arith.constant 0 : i32
    %c0_i32_1 = arith.constant 0 : i32
    return %c0_i32, %c0_i32_0 : i32, i32
  }
  func.func @transform_9(%arg0: i32, %arg1: i32) -> (i32, i32) {
    %c0_i32 = arith.constant 0 : i32
    %c0_i32_0 = arith.constant 0 : i32
    %c0_i32_1 = arith.constant 0 : i32
    return %c0_i32, %c0_i32_0 : i32, i32
  }
  func.func @transform_10(%arg0: i32, %arg1: i32) -> (i32, i32) {
    %c0_i32 = arith.constant 0 : i32
    %c0_i32_0 = arith.constant 0 : i32
    %c0_i32_1 = arith.constant 0 : i32
    return %c0_i32, %c0_i32_0 : i32, i32
  }
  func.func @transform_11(%arg0: i32, %arg1: i32) -> (i32, i32) {
    %c0_i32 = arith.constant 0 : i32
    %c0_i32_0 = arith.constant 0 : i32
    %c0_i32_1 = arith.constant 0 : i32
    return %c0_i32, %c0_i32_0 : i32, i32
  }
  func.func @transform_12(%arg0: i32, %arg1: i32) -> (i32, i32, i32) {
    %c0_i32 = arith.constant 0 : i32
    %c0_i32_0 = arith.constant 0 : i32
    return %arg0, %arg1, %c0_i32 : i32, i32, i32
  }
}

</mosaic_0001>

<llo_original>
// kernel: decoder_forward.1
$region0: #{decoder_forward.1}
  #allocation0 [shape = 'u32[]', space=smem, size = 0x4, offset = 0x4, fixed_abs, tag = 'smem constant byte address 0x4 - core index']
  #allocation1 [shape = 'u32[72,128]{1,0:T(1,128)}', space=vmem, size = 0x9000, scoped, tag = 'internal scratch']
  %s0 = inlined_call_operand.vmem [shape: f32[8,128], index: 0, kind: input, shape index: {}]
  %s1 = inlined_call_operand.vmem [shape: f32[8,64], index: 1, kind: input, shape index: {}]
  %s2 = inlined_call_operand.vmem [shape: f32[64,128], index: 2, kind: input, shape index: {}]
  %s3 = inlined_call_operand.vmem [shape: f32[1,128], index: 3, kind: input, shape index: {}]
  %s4 = inlined_call_operand.vmem [shape: f32[128,128], index: 4, kind: input, shape index: {}]
  %s5 = inlined_call_operand.vmem [shape: f32[1,128], index: 5, kind: input, shape index: {}]
  %s6 = inlined_call_operand.vmem [shape: f32[128,128], index: 6, kind: input, shape index: {}]
  %s7 = inlined_call_operand.vmem [shape: f32[1,128], index: 7, kind: input, shape index: {}]
  %s8 = inlined_call_operand.hbm [shape: f32[128,128], index: 8, kind: input, shape index: {}]
  %s9 = inlined_call_operand.vmem [shape: f32[1,128], index: 9, kind: input, shape index: {}]
  %s10 = inlined_call_operand.vmem [shape: f32[128,8], index: 10, kind: input, shape index: {}]
  %s11 = inlined_call_operand.vmem [shape: f32[1,8], index: 11, kind: input, shape index: {}]
  %s12 = inlined_call_operand.vmem [shape: f32[8,8,8], index: 12, kind: output, shape index: {}]
  %s13 = sld [smem:[#allocation0]]
  $region62: #{decoder_forward.1} parent=0
    _
  %s15 = ssub.s32 1, %s13
  %s16 = scalar_select 0, %s15, %s13
  $region1: #{decoder_forward.1} parent=0
    #allocation2 [shape = 'u8[65536]{0}', space=vmem, size = 0x10000, scoped, tag = 'input window, operand 8, single buffered']
    #allocation3 [shape = 's32[1]{0}', space=sflag, size = 0x4, scoped, tag = 'scoped memory for decoder_forward.1']
    %17 = vsyncpa [#allocation3], 0
    // Predicated region
    $region2: #{decoder_forward.1} parent=1 // pred_check
      _
    $region3: #{decoder_forward.1} parent=1 // pred_check_branch
      %19 = sbr.rel (0) target = $region5
    $region4: #{decoder_forward.1} parent=1 // pred_region
      _
    $region5: #{decoder_forward.1} parent=1 // pred_fallthru
      _
    // Predicated region
    $region6: #{decoder_forward.1} parent=1 // pred_check
      _
    $region7: #{decoder_forward.1} parent=1 // pred_check_branch
      %21 = sbr.rel (0) target = $region9
    $region8: #{decoder_forward.1} parent=1 // pred_region
      _
    $region9: #{decoder_forward.1} parent=1 // pred_fallthru
      _
    // Predicated region
    $region10: #{decoder_forward.1} parent=1 // pred_check
      _
    $region11: #{decoder_forward.1} parent=1 // pred_check_branch
      %23 = sbr.rel (0) target = $region13
    $region12: #{decoder_forward.1} parent=1 // pred_region
      _
    $region13: #{decoder_forward.1} parent=1 // pred_fallthru
      _
    // Predicated region
    $region14: #{decoder_forward.1} parent=1 // pred_check
      _
    $region15: #{decoder_forward.1} parent=1 // pred_check_branch
      %25 = sbr.rel (0) target = $region17
    $region16: #{decoder_forward.1} parent=1 // pred_region
      _
    $region17: #{decoder_forward.1} parent=1 // pred_fallthru
      _
    // Predicated region
    $region18: #{decoder_forward.1} parent=1 // pred_check
      _
    $region19: #{decoder_forward.1} parent=1 // pred_check_branch
      %27 = sbr.rel (0) target = $region21
    $region20: #{decoder_forward.1} parent=1 // pred_region
      _
    $region21: #{decoder_forward.1} parent=1 // pred_fallthru
      _
    // Predicated region
    $region22: #{decoder_forward.1} parent=1 // pred_check
      _
    $region23: #{decoder_forward.1} parent=1 // pred_check_branch
      %29 = sbr.rel (0) target = $region25
    $region24: #{decoder_forward.1} parent=1 // pred_region
      _
    $region25: #{decoder_forward.1} parent=1 // pred_fallthru
      _
    // Predicated region
    $region26: #{decoder_forward.1} parent=1 // pred_check
      _
    $region27: #{decoder_forward.1} parent=1 // pred_check_branch
      %31 = sbr.rel (0) target = $region29
    $region28: #{decoder_forward.1} parent=1 // pred_region
      _
    $region29: #{decoder_forward.1} parent=1 // pred_fallthru
      _
    // Predicated region
    $region30: #{decoder_forward.1} parent=1 // pred_check
      _
    $region31: #{decoder_forward.1} parent=1 // pred_check_branch
      %33 = sbr.rel (0) target = $region33
    $region32: #{decoder_forward.1} parent=1 // pred_region
      _
    $region33: #{decoder_forward.1} parent=1 // pred_fallthru
      _
    // Predicated region
    $region34: #{decoder_forward.1} parent=1 // pred_check
      _
    $region35: #{decoder_forward.1} parent=1 // pred_check_branch
      %35 = sbr.rel (0) target = $region37
    $region36: #{decoder_forward.1} parent=1 // pred_region
      %37 = vsyncadd [#allocation3], 0
      %s38 = sshll.u32 %s8, 4
      %s39 = int_to_ptr.hbm [resolvable:$true] %s38
      %s40 = sshll.u32 [#allocation2], 4
      %s41 = int_to_ptr.vmem [resolvable:$true] %s40
      %46 = dma.hbm_to_vmem [thread:$0]  %s39, 2048, %s41, [#allocation3], 128, 128, 8
    $region37: #{decoder_forward.1} parent=1 // pred_fallthru
      _
    // Predicated region
    $region38: #{decoder_forward.1} parent=1 // pred_check
      _
    $region39: #{decoder_forward.1} parent=1 // pred_check_branch
      %48 = sbr.rel (0) target = $region41
    $region40: #{decoder_forward.1} parent=1 // pred_region
      _
    $region41: #{decoder_forward.1} parent=1 // pred_fallthru
      _
    // Predicated region
    $region42: #{decoder_forward.1} parent=1 // pred_check
      _
    $region43: #{decoder_forward.1} parent=1 // pred_check_branch
      %50 = sbr.rel (0) target = $region45
    $region44: #{decoder_forward.1} parent=1 // pred_region
      _
    $region45: #{decoder_forward.1} parent=1 // pred_fallthru
      _
    // Predicated region
    $region46: #{decoder_forward.1} parent=1 // pred_check
      _
    $region47: #{decoder_forward.1} parent=1 // pred_check_branch
      %52 = sbr.rel (0) target = $region49
    $region48: #{decoder_forward.1} parent=1 // pred_region
      _
    $region49: #{decoder_forward.1} parent=1 // pred_fallthru
      _
    // Predicated region
    $region50: #{decoder_forward.1} parent=1 // pred_check
      _
    $region51: #{decoder_forward.1} parent=1 // pred_check_branch
      %54 = sbr.rel (0) target = $region53
    $region52: #{decoder_forward.1} parent=1 // pred_region
      %56 = dma.done [#allocation3], 2048
    $region53: #{decoder_forward.1} parent=1 // pred_fallthru
      _
    %v57 = vld [vmem:[%s1] sm:$0xff]
    %v58 = vld [vmem:[%s2] sm:$0xff]
    %v59 = vld [vmem:[%s2 + $0x8] sm:$0xff]
    %v60 = vld [vmem:[%s2 + $0x10] sm:$0xff]
    %v61 = vld [vmem:[%s2 + $0x18] sm:$0xff]
    %v62 = vld [vmem:[%s2 + $0x20] sm:$0xff]
    %v63 = vld [vmem:[%s2 + $0x28] sm:$0xff]
    %v64 = vld [vmem:[%s2 + $0x30] sm:$0xff]
    %v65 = vld [vmem:[%s2 + $0x38] sm:$0xff]
    %v66 = vld [vmem:[%s3] sm:$0x1]
    %v68 = vperm.slane %v66, 0
    %vm70 = vcmask 523264
    %v72 = vsel %vm70, %v57, 0
    %74 = vmatpush.msra.mxu0 0.0
    %75 = vmatpush.msra.mxu0 0.0
    %76 = vmatpush.msra.mxu0 0.0
    %77 = vmatpush.msra.mxu0 0.0
    %78 = vmatpush.msra.mxu0 0.0
    %79 = vmatpush.msra.mxu0 0.0
    %80 = vmatpush.msra.mxu0 0.0
    %81 = vmatpush.msra.mxu0 0.0
    %82 = vmatpush.msra.mxu0 %v65
    %83 = vmatpush.msra.mxu0 %v64
    %84 = vmatpush.msra.mxu0 %v63
    %85 = vmatpush.msra.mxu0 %v62
    %86 = vmatpush.msra.mxu0 %v61
    %87 = vmatpush.msra.mxu0 %v60
    %88 = vmatpush.msra.mxu0 %v59
    %89 = vmatpush.msra.mxu0 %v58
    %90 = vmatmul.f32.gmra.mxu0 %v72
    %v91 = vpop.f32.mrf.mxu0
    %v92 = vadd.f32 %v68, %v91
    %93 = vdwg.mxu0
    %v95 = vrot.slane %v92, 1
    %v96 = vrot.slane %v92, 2
    %v97 = vrot.slane %v92, 3
    %v98 = vrot.slane %v92, 4
    %v99 = vrot.slane %v92, 5
    %v100 = vrot.slane %v92, 6
    %v101 = vrot.slane %v92, 7
    %v102 = vld [vmem:[%s0] sm:$0xff]
    %v103 = vperm.slane %v92, 0
    %v104 = vperm.slane %v95, 0
    %v105 = vperm.slane %v96, 0
    %v106 = vperm.slane %v97, 0
    %v107 = vperm.slane %v98, 0
    %v108 = vperm.slane %v99, 0
    %v109 = vperm.slane %v100, 0
    %v110 = vperm.slane %v101, 0
    %v119 = vadd.f32 %v103, %v102
    %v120 = vadd.f32 %v104, %v102
    %v121 = vadd.f32 %v105, %v102
    %v122 = vadd.f32 %v106, %v102
    %v123 = vadd.f32 %v107, %v102
    %v124 = vadd.f32 %v108, %v102
    %v125 = vadd.f32 %v109, %v102
    %v126 = vadd.f32 %v110, %v102
    %v127 = vmax.f32 %v119, 0.0
    %v128 = vmax.f32 %v120, 0.0
    %v129 = vmax.f32 %v121, 0.0
    %v130 = vmax.f32 %v122, 0.0
    %v131 = vmax.f32 %v123, 0.0
    %v132 = vmax.f32 %v124, 0.0
    %v133 = vmax.f32 %v125, 0.0
    %v134 = vmax.f32 %v126, 0.0
    %v135 = vld [vmem:[%s4] sm:$0xff]
    %v136 = vld [vmem:[%s4 + $0x8] sm:$0xff]
    %v137 = vld [vmem:[%s4 + $0x10] sm:$0xff]
    %v138 = vld [vmem:[%s4 + $0x18] sm:$0xff]
    %v139 = vld [vmem:[%s4 + $0x20] sm:$0xff]
    %v140 = vld [vmem:[%s4 + $0x28] sm:$0xff]
    %v141 = vld [vmem:[%s4 + $0x30] sm:$0xff]
    %v142 = vld [vmem:[%s4 + $0x38] sm:$0xff]
    %v143 = vld [vmem:[%s4 + $0x40] sm:$0xff]
    %v144 = vld [vmem:[%s4 + $0x48] sm:$0xff]
    %v145 = vld [vmem:[%s4 + $0x50] sm:$0xff]
    %v146 = vld [vmem:[%s4 + $0x58] sm:$0xff]
    %v147 = vld [vmem:[%s4 + $0x60] sm:$0xff]
    %v148 = vld [vmem:[%s4 + $0x68] sm:$0xff]
    %v149 = vld [vmem:[%s4 + $0x70] sm:$0xff]
    %v150 = vld [vmem:[%s4 + $0x78] sm:$0xff]
    %v151 = vld [vmem:[%s5] sm:$0x1]
    %v153 = vperm.slane %v151, 0
    %155 = vmatpush.msra.mxu0 %v150
    %156 = vmatpush.msra.mxu0 %v149
    %157 = vmatpush.msra.mxu0 %v148
    %158 = vmatpush.msra.mxu0 %v147
    %159 = vmatpush.msra.mxu0 %v146
    %160 = vmatpush.msra.mxu0 %v145
    %161 = vmatpush.msra.mxu0 %v144
    %162 = vmatpush.msra.mxu0 %v143
    %163 = vmatpush.msra.mxu0 %v142
    %164 = vmatpush.msra.mxu0 %v141
    %165 = vmatpush.msra.mxu0 %v140
    %166 = vmatpush.msra.mxu0 %v139
    %167 = vmatpush.msra.mxu0 %v138
    %168 = vmatpush.msra.mxu0 %v137
    %169 = vmatpush.msra.mxu0 %v136
    %170 = vmatpush.msra.mxu0 %v135
    %171 = vmatmul.f32.gmra.mxu0 %v127
    %v172 = vpop.f32.mrf.mxu0
    %v173 = vadd.f32 %v153, %v172
    %174 = vmatmul.f32.gmra.mxu0 %v128
    %v175 = vpop.f32.mrf.mxu0
    %v176 = vadd.f32 %v153, %v175
    %177 = vmatmul.f32.gmra.mxu0 %v129
    %v178 = vpop.f32.mrf.mxu0
    %v179 = vadd.f32 %v153, %v178
    %180 = vmatmul.f32.gmra.mxu0 %v130
    %v181 = vpop.f32.mrf.mxu0
    %v182 = vadd.f32 %v153, %v181
    %183 = vmatmul.f32.gmra.mxu0 %v131
    %v184 = vpop.f32.mrf.mxu0
    %v185 = vadd.f32 %v153, %v184
    %186 = vmatmul.f32.gmra.mxu0 %v132
    %v187 = vpop.f32.mrf.mxu0
    %v188 = vadd.f32 %v153, %v187
    %189 = vmatmul.f32.gmra.mxu0 %v133
    %v190 = vpop.f32.mrf.mxu0
    %v191 = vadd.f32 %v153, %v190
    %192 = vmatmul.f32.gmra.mxu0 %v134
    %v193 = vpop.f32.mrf.mxu0
    %v194 = vadd.f32 %v153, %v193
    %195 = vdwg.mxu0
    %v196 = vmax.f32 %v173, 0.0
    %v197 = vmax.f32 %v176, 0.0
    %v198 = vmax.f32 %v179, 0.0
    %v199 = vmax.f32 %v182, 0.0
    %v200 = vmax.f32 %v185, 0.0
    %v201 = vmax.f32 %v188, 0.0
    %v202 = vmax.f32 %v191, 0.0
    %v203 = vmax.f32 %v194, 0.0
    %v204 = vld [vmem:[%s6] sm:$0xff]
    %v205 = vld [vmem:[%s6 + $0x8] sm:$0xff]
    %v206 = vld [vmem:[%s6 + $0x10] sm:$0xff]
    %v207 = vld [vmem:[%s6 + $0x18] sm:$0xff]
    %v208 = vld [vmem:[%s6 + $0x20] sm:$0xff]
    %v209 = vld [vmem:[%s6 + $0x28] sm:$0xff]
    %v210 = vld [vmem:[%s6 + $0x30] sm:$0xff]
    %v211 = vld [vmem:[%s6 + $0x38] sm:$0xff]
    %v212 = vld [vmem:[%s6 + $0x40] sm:$0xff]
    %v213 = vld [vmem:[%s6 + $0x48] sm:$0xff]
    %v214 = vld [vmem:[%s6 + $0x50] sm:$0xff]
    %v215 = vld [vmem:[%s6 + $0x58] sm:$0xff]
    %v216 = vld [vmem:[%s6 + $0x60] sm:$0xff]
    %v217 = vld [vmem:[%s6 + $0x68] sm:$0xff]
    %v218 = vld [vmem:[%s6 + $0x70] sm:$0xff]
    %v219 = vld [vmem:[%s6 + $0x78] sm:$0xff]
    %v220 = vld [vmem:[%s7] sm:$0x1]
    %v222 = vperm.slane %v220, 0
    %224 = vmatpush.msra.mxu0 %v219
    %225 = vmatpush.msra.mxu0 %v218
    %226 = vmatpush.msra.mxu0 %v217
    %227 = vmatpush.msra.mxu0 %v216
    %228 = vmatpush.msra.mxu0 %v215
    %229 = vmatpush.msra.mxu0 %v214
    %230 = vmatpush.msra.mxu0 %v213
    %231 = vmatpush.msra.mxu0 %v212
    %232 = vmatpush.msra.mxu0 %v211
    %233 = vmatpush.msra.mxu0 %v210
    %234 = vmatpush.msra.mxu0 %v209
    %235 = vmatpush.msra.mxu0 %v208
    %236 = vmatpush.msra.mxu0 %v207
    %237 = vmatpush.msra.mxu0 %v206
    %238 = vmatpush.msra.mxu0 %v205
    %239 = vmatpush.msra.mxu0 %v204
    %240 = vmatmul.f32.gmra.mxu0 %v196
    %v241 = vpop.f32.mrf.mxu0
    %v242 = vadd.f32 %v222, %v241
    %243 = vmatmul.f32.gmra.mxu0 %v197
    %v244 = vpop.f32.mrf.mxu0
    %v245 = vadd.f32 %v222, %v244
    %246 = vmatmul.f32.gmra.mxu0 %v198
    %v247 = vpop.f32.mrf.mxu0
    %v248 = vadd.f32 %v222, %v247
    %249 = vmatmul.f32.gmra.mxu0 %v199
    %v250 = vpop.f32.mrf.mxu0
    %v251 = vadd.f32 %v222, %v250
    %252 = vmatmul.f32.gmra.mxu0 %v200
    %v253 = vpop.f32.mrf.mxu0
    %v254 = vadd.f32 %v222, %v253
    %255 = vmatmul.f32.gmra.mxu0 %v201
    %v256 = vpop.f32.mrf.mxu0
    %v257 = vadd.f32 %v222, %v256
    %258 = vmatmul.f32.gmra.mxu0 %v202
    %v259 = vpop.f32.mrf.mxu0
    %v260 = vadd.f32 %v222, %v259
    %261 = vmatmul.f32.gmra.mxu0 %v203
    %v262 = vpop.f32.mrf.mxu0
    %v263 = vadd.f32 %v222, %v262
    %264 = vdwg.mxu0
    %v265 = vmax.f32 %v242, 0.0
    %v266 = vmax.f32 %v245, 0.0
    %v267 = vmax.f32 %v248, 0.0
    %v268 = vmax.f32 %v251, 0.0
    %v269 = vmax.f32 %v254, 0.0
    %v270 = vmax.f32 %v257, 0.0
    %v271 = vmax.f32 %v260, 0.0
    %v272 = vmax.f32 %v263, 0.0
    %v273 = vld [vmem:[#allocation2] sm:$0xff]
    %v274 = vld [vmem:[#allocation2 + $0x8] sm:$0xff]
    %v275 = vld [vmem:[#allocation2 + $0x10] sm:$0xff]
    %v276 = vld [vmem:[#allocation2 + $0x18] sm:$0xff]
    %v277 = vld [vmem:[#allocation2 + $0x20] sm:$0xff]
    %v278 = vld [vmem:[#allocation2 + $0x28] sm:$0xff]
    %v279 = vld [vmem:[#allocation2 + $0x30] sm:$0xff]
    %v280 = vld [vmem:[#allocation2 + $0x38] sm:$0xff]
    %v281 = vld [vmem:[#allocation2 + $0x40] sm:$0xff]
    %v282 = vld [vmem:[#allocation2 + $0x48] sm:$0xff]
    %v283 = vld [vmem:[#allocation2 + $0x50] sm:$0xff]
    %v284 = vld [vmem:[#allocation2 + $0x58] sm:$0xff]
    %v285 = vld [vmem:[#allocation2 + $0x60] sm:$0xff]
    %v286 = vld [vmem:[#allocation2 + $0x68] sm:$0xff]
    %v287 = vld [vmem:[#allocation2 + $0x70] sm:$0xff]
    %v288 = vld [vmem:[#allocation2 + $0x78] sm:$0xff]
    %v289 = vld [vmem:[%s9] sm:$0x1]
    %v291 = vperm.slane %v289, 0
    %293 = vmatpush.msra.mxu0 %v288
    %294 = vmatpush.msra.mxu0 %v287
    %295 = vmatpush.msra.mxu0 %v286
    %296 = vmatpush.msra.mxu0 %v285
    %297 = vmatpush.msra.mxu0 %v284
    %298 = vmatpush.msra.mxu0 %v283
    %299 = vmatpush.msra.mxu0 %v282
    %300 = vmatpush.msra.mxu0 %v281
    %301 = vmatpush.msra.mxu0 %v280
    %302 = vmatpush.msra.mxu0 %v279
    %303 = vmatpush.msra.mxu0 %v278
    %304 = vmatpush.msra.mxu0 %v277
    %305 = vmatpush.msra.mxu0 %v276
    %306 = vmatpush.msra.mxu0 %v275
    %307 = vmatpush.msra.mxu0 %v274
    %308 = vmatpush.msra.mxu0 %v273
    %309 = vmatmul.f32.gmra.mxu0 %v265
    %v310 = vpop.f32.mrf.mxu0
    %v311 = vadd.f32 %v291, %v310
    %312 = vmatmul.f32.gmra.mxu0 %v266
    %v313 = vpop.f32.mrf.mxu0
    %v314 = vadd.f32 %v291, %v313
    %315 = vmatmul.f32.gmra.mxu0 %v267
    %v316 = vpop.f32.mrf.mxu0
    %v317 = vadd.f32 %v291, %v316
    %318 = vmatmul.f32.gmra.mxu0 %v268
    %v319 = vpop.f32.mrf.mxu0
    %v320 = vadd.f32 %v291, %v319
    %321 = vmatmul.f32.gmra.mxu0 %v269
    %v322 = vpop.f32.mrf.mxu0
    %v323 = vadd.f32 %v291, %v322
    %324 = vmatmul.f32.gmra.mxu0 %v270
    %v325 = vpop.f32.mrf.mxu0
    %v326 = vadd.f32 %v291, %v325
    %327 = vmatmul.f32.gmra.mxu0 %v271
    %v328 = vpop.f32.mrf.mxu0
    %v329 = vadd.f32 %v291, %v328
    %330 = vmatmul.f32.gmra.mxu0 %v272
    %v331 = vpop.f32.mrf.mxu0
    %v332 = vadd.f32 %v291, %v331
    %333 = vdwg.mxu0
    %v334 = vmax.f32 %v311, 0.0
    %v335 = vmax.f32 %v314, 0.0
    %v336 = vmax.f32 %v317, 0.0
    %v337 = vmax.f32 %v320, 0.0
    %v338 = vmax.f32 %v323, 0.0
    %v339 = vmax.f32 %v326, 0.0
    %v340 = vmax.f32 %v329, 0.0
    %v341 = vmax.f32 %v332, 0.0
    %v342 = vld [vmem:[%s10] sm:$0xff]
    %v343 = vld [vmem:[%s10 + $0x8] sm:$0xff]
    %v344 = vld [vmem:[%s10 + $0x10] sm:$0xff]
    %v345 = vld [vmem:[%s10 + $0x18] sm:$0xff]
    %v346 = vld [vmem:[%s10 + $0x20] sm:$0xff]
    %v347 = vld [vmem:[%s10 + $0x28] sm:$0xff]
    %v348 = vld [vmem:[%s10 + $0x30] sm:$0xff]
    %v349 = vld [vmem:[%s10 + $0x38] sm:$0xff]
    %v350 = vld [vmem:[%s10 + $0x40] sm:$0xff]
    %v351 = vld [vmem:[%s10 + $0x48] sm:$0xff]
    %v352 = vld [vmem:[%s10 + $0x50] sm:$0xff]
    %v353 = vld [vmem:[%s10 + $0x58] sm:$0xff]
    %v354 = vld [vmem:[%s10 + $0x60] sm:$0xff]
    %v355 = vld [vmem:[%s10 + $0x68] sm:$0xff]
    %v356 = vld [vmem:[%s10 + $0x70] sm:$0xff]
    %v357 = vld [vmem:[%s10 + $0x78] sm:$0xff]
    %v358 = vld [vmem:[%s11] sm:$0x1]
    %v360 = vperm.slane %v358, 0
    %362 = vmatpush.msra.mxu0 %v357
    %363 = vmatpush.msra.mxu0 %v356
    %364 = vmatpush.msra.mxu0 %v355
    %365 = vmatpush.msra.mxu0 %v354
    %366 = vmatpush.msra.mxu0 %v353
    %367 = vmatpush.msra.mxu0 %v352
    %368 = vmatpush.msra.mxu0 %v351
    %369 = vmatpush.msra.mxu0 %v350
    %370 = vmatpush.msra.mxu0 %v349
    %371 = vmatpush.msra.mxu0 %v348
    %372 = vmatpush.msra.mxu0 %v347
    %373 = vmatpush.msra.mxu0 %v346
    %374 = vmatpush.msra.mxu0 %v345
    %375 = vmatpush.msra.mxu0 %v344
    %376 = vmatpush.msra.mxu0 %v343
    %377 = vmatpush.msra.mxu0 %v342
    %378 = vmatmul.f32.gmra.mxu0 %v334
    %v379 = vpop.f32.mrf.mxu0
    %v380 = vadd.f32 %v360, %v379
    %381 = vmatmul.f32.gmra.mxu0 %v335
    %v382 = vpop.f32.mrf.mxu0
    %v383 = vadd.f32 %v360, %v382
    %384 = vmatmul.f32.gmra.mxu0 %v336
    %v385 = vpop.f32.mrf.mxu0
    %v386 = vadd.f32 %v360, %v385
    %387 = vmatmul.f32.gmra.mxu0 %v337
    %v388 = vpop.f32.mrf.mxu0
    %v389 = vadd.f32 %v360, %v388
    %390 = vmatmul.f32.gmra.mxu0 %v338
    %v391 = vpop.f32.mrf.mxu0
    %v392 = vadd.f32 %v360, %v391
    %393 = vmatmul.f32.gmra.mxu0 %v339
    %v394 = vpop.f32.mrf.mxu0
    %v395 = vadd.f32 %v360, %v394
    %396 = vmatmul.f32.gmra.mxu0 %v340
    %v397 = vpop.f32.mrf.mxu0
    %v398 = vadd.f32 %v360, %v397
    %399 = vmatmul.f32.gmra.mxu0 %v341
    %v400 = vpop.f32.mrf.mxu0
    %v401 = vadd.f32 %v360, %v400
    %402 = vdwg.mxu0
    %v403 = vlaneseq
    %v404 = vand.u32 %v403, 127
    %vm405 = vcmp.ge.s32.totalorder %v404, 4
    %v406 = vmax.f32 %v380, 0.0
    %v407 = vmax.f32 %v383, 0.0
    %v408 = vmax.f32 %v386, 0.0
    %v409 = vmax.f32 %v389, 0.0
    %v410 = vmax.f32 %v392, 0.0
    %v411 = vmax.f32 %v395, 0.0
    %v412 = vmax.f32 %v398, 0.0
    %v413 = vmax.f32 %v401, 0.0
    %v414 = vand.u32 2147483647, %v380
    %v415 = vand.u32 2147483647, %v383
    %v416 = vand.u32 2147483647, %v386
    %v417 = vand.u32 2147483647, %v389
    %v418 = vand.u32 2147483647, %v392
    %v419 = vand.u32 2147483647, %v395
    %v420 = vand.u32 2147483647, %v398
    %v421 = vand.u32 2147483647, %v401
    %v422 = vsub.f32 0.0, %v414
    %v423 = vsub.f32 0.0, %v415
    %v424 = vsub.f32 0.0, %v416
    %v425 = vsub.f32 0.0, %v417
    %v426 = vsub.f32 0.0, %v418
    %v427 = vsub.f32 0.0, %v419
    %v428 = vsub.f32 0.0, %v420
    %v429 = vsub.f32 0.0, %v421
    %v430 = vmul.f32 %v422, 1.442695
    %v431 = vpow.pop %v430
    %v432 = vmul.f32 %v423, 1.442695
    %v433 = vpow.pop %v432
    %v434 = vmul.f32 %v424, 1.442695
    %v435 = vpow.pop %v434
    %v436 = vmul.f32 %v425, 1.442695
    %v437 = vpow.pop %v436
    %v438 = vmul.f32 %v426, 1.442695
    %v439 = vpow.pop %v438
    %v440 = vmul.f32 %v427, 1.442695
    %v441 = vpow.pop %v440
    %v442 = vmul.f32 %v428, 1.442695
    %v443 = vpow.pop %v442
    %v444 = vmul.f32 %v429, 1.442695
    %v445 = vpow.pop %v444
    %v446 = vadd.f32 %v431, 1.0
    %v447 = vlog2.pop %v446
    %v448 = vmul.f32 %v447, 0.6931472
    %v449 = vmul.f32 -0.5, %v431
    %v450 = vadd.f32 %v449, 1.0
    %v451 = vmul.f32 %v450, %v431
    %v452 = vand.u32 2147483647, %v431
    %vm453 = vcmp.lt.f32.partialorder %v452, 0.0004427343
    %v454 = vsel %vm453, %v451, %v448
    %v455 = vadd.f32 %v433, 1.0
    %v456 = vlog2.pop %v455
    %v457 = vmul.f32 %v456, 0.6931472
    %v458 = vmul.f32 -0.5, %v433
    %v459 = vadd.f32 %v458, 1.0
    %v460 = vmul.f32 %v459, %v433
    %v461 = vand.u32 2147483647, %v433
    %vm462 = vcmp.lt.f32.partialorder %v461, 0.0004427343
    %v463 = vsel %vm462, %v460, %v457
    %v464 = vadd.f32 %v435, 1.0
    %v465 = vlog2.pop %v464
    %v466 = vmul.f32 %v465, 0.6931472
    %v467 = vmul.f32 -0.5, %v435
    %v468 = vadd.f32 %v467, 1.0
    %v469 = vmul.f32 %v468, %v435
    %v470 = vand.u32 2147483647, %v435
    %vm471 = vcmp.lt.f32.partialorder %v470, 0.0004427343
    %v472 = vsel %vm471, %v469, %v466
    %v473 = vadd.f32 %v437, 1.0
    %v474 = vlog2.pop %v473
    %v475 = vmul.f32 %v474, 0.6931472
    %v476 = vmul.f32 -0.5, %v437
    %v477 = vadd.f32 %v476, 1.0
    %v478 = vmul.f32 %v477, %v437
    %v479 = vand.u32 2147483647, %v437
    %vm480 = vcmp.lt.f32.partialorder %v479, 0.0004427343
    %v481 = vsel %vm480, %v478, %v475
    %v482 = vadd.f32 %v439, 1.0
    %v483 = vlog2.pop %v482
    %v484 = vmul.f32 %v483, 0.6931472
    %v485 = vmul.f32 -0.5, %v439
    %v486 = vadd.f32 %v485, 1.0
    %v487 = vmul.f32 %v486, %v439
    %v488 = vand.u32 2147483647, %v439
    %vm489 = vcmp.lt.f32.partialorder %v488, 0.0004427343
    %v490 = vsel %vm489, %v487, %v484
    %v491 = vadd.f32 %v441, 1.0
    %v492 = vlog2.pop %v491
    %v493 = vmul.f32 %v492, 0.6931472
    %v494 = vmul.f32 -0.5, %v441
    %v495 = vadd.f32 %v494, 1.0
    %v496 = vmul.f32 %v495, %v441
    %v497 = vand.u32 2147483647, %v441
    %vm498 = vcmp.lt.f32.partialorder %v497, 0.0004427343
    %v499 = vsel %vm498, %v496, %v493
    %v500 = vadd.f32 %v443, 1.0
    %v501 = vlog2.pop %v500
    %v502 = vmul.f32 %v501, 0.6931472
    %v503 = vmul.f32 -0.5, %v443
    %v504 = vadd.f32 %v503, 1.0
    %v505 = vmul.f32 %v504, %v443
    %v506 = vand.u32 2147483647, %v443
    %vm507 = vcmp.lt.f32.partialorder %v506, 0.0004427343
    %v508 = vsel %vm507, %v505, %v502
    %v509 = vadd.f32 %v445, 1.0
    %v510 = vlog2.pop %v509
    %v511 = vmul.f32 %v510, 0.6931472
    %v512 = vmul.f32 -0.5, %v445
    %v513 = vadd.f32 %v512, 1.0
    %v514 = vmul.f32 %v513, %v445
    %v515 = vand.u32 2147483647, %v445
    %vm516 = vcmp.lt.f32.partialorder %v515, 0.0004427343
    %v517 = vsel %vm516, %v514, %v511
    %v518 = vadd.f32 %v406, %v454
    %v519 = vadd.f32 %v407, %v463
    %v520 = vadd.f32 %v408, %v472
    %v521 = vadd.f32 %v409, %v481
    %v522 = vadd.f32 %v410, %v490
    %v523 = vadd.f32 %v411, %v499
    %v524 = vadd.f32 %v412, %v508
    %v525 = vadd.f32 %v413, %v517
    %v526 = vmul.f32 %v518, 0.9
    %v527 = vmul.f32 %v519, 0.9
    %v528 = vmul.f32 %v520, 0.9
    %v529 = vmul.f32 %v521, 0.9
    %v530 = vmul.f32 %v522, 0.9
    %v531 = vmul.f32 %v523, 0.9
    %v532 = vmul.f32 %v524, 0.9
    %v533 = vmul.f32 %v525, 0.9
    %v534 = vadd.f32 %v526, 0.1
    %v535 = vadd.f32 %v527, 0.1
    %v536 = vadd.f32 %v528, 0.1
    %v537 = vadd.f32 %v529, 0.1
    %v538 = vadd.f32 %v530, 0.1
    %v539 = vadd.f32 %v531, 0.1
    %v540 = vadd.f32 %v532, 0.1
    %v541 = vadd.f32 %v533, 0.1
    %v542 = vsel %vm405, 1, 0
    %vm543 = vcmp.eq.s32.totalorder %v542, 1
    %v544 = vsel %vm543, %v534, %v380
    %v545 = vsel %vm543, %v535, %v383
    %v546 = vsel %vm543, %v536, %v386
    %v547 = vsel %vm543, %v537, %v389
    %v548 = vsel %vm543, %v538, %v392
    %v549 = vsel %vm543, %v539, %v395
    %v550 = vsel %vm543, %v540, %v398
    %v551 = vsel %vm543, %v541, %v401
    %vm552 = vcmask 64512
    %553 = vst.msk [vmem:[%s12] sm:$0xff] %vm552, %v544
    %554 = vst.msk [vmem:[%s12 + $0x8] sm:$0xff] %vm552, %v545
    %555 = vst.msk [vmem:[%s12 + $0x10] sm:$0xff] %vm552, %v546
    %556 = vst.msk [vmem:[%s12 + $0x18] sm:$0xff] %vm552, %v547
    %557 = vst.msk [vmem:[%s12 + $0x20] sm:$0xff] %vm552, %v548
    %558 = vst.msk [vmem:[%s12 + $0x28] sm:$0xff] %vm552, %v549
    %559 = vst.msk [vmem:[%s12 + $0x30] sm:$0xff] %vm552, %v550
    %560 = vst.msk [vmem:[%s12 + $0x38] sm:$0xff] %vm552, %v551
    // Predicated region
    $region54: #{decoder_forward.1} parent=1 // pred_check
      _
    $region55: #{decoder_forward.1} parent=1 // pred_check_branch
      %562 = sbr.rel (0) target = $region57
    $region56: #{decoder_forward.1} parent=1 // pred_region
      _
    $region57: #{decoder_forward.1} parent=1 // pred_fallthru
      _
    // Predicated region
    $region58: #{decoder_forward.1} parent=1 // pred_check
      _
    $region59: #{decoder_forward.1} parent=1 // pred_check_branch
      %564 = sbr.rel (0) target = $region61
    $region60: #{decoder_forward.1} parent=1 // pred_region
      _
    $region61: #{decoder_forward.1} parent=1 // pred_fallthru
      _
    %565 = vsyncpa [#allocation3], 1

</llo_original>
